<compile_context>
chip_gen: v7x
topology: tpu7x:2x2x1
jax: 0.10.0
libtpu: 0.0.40
codegen_flags: <defaults>
</compile_context>

<pallas_src>
import functools

import jax
import jax.numpy as jnp
from jax.experimental import pallas as pl
from jax.experimental.pallas import tpu as pltpu


def _round_up(v, m):
    return (v + m - 1) // m * m


def _round_down(v, m):
    return (v // m) * m


def _simam_kernel(x_ref, o_ref, *, inv_hw, inv_n, e_lambda):
    # x_ref: (TR, HW) tile -- TR channel-rows, HW lanes each.
    x_in = x_ref[...]
    xf = x_in.astype(jnp.float32)

    # Per-row (per-channel) spatial mean and sum of squared deviations.
    mu = jnp.sum(xf, axis=-1, keepdims=True) * inv_hw          # (TR, 1)
    d = xf - mu
    d = d * d                                                  # (x - mu)^2
    s = jnp.sum(d, axis=-1, keepdims=True)                     # (TR, 1)

    # y = d / (4 * (s / n + e_lambda)) + 0.5
    denom = 4.0 * (s * inv_n + e_lambda)                       # strictly > 0
    inv = pl.reciprocal(denom, approx=True)                    # EUP slot
    y = d * inv + 0.5
    att = jax.nn.sigmoid(y)

    # Final multiply in the input dtype (keeps bf16 resident on v6e/v7x; for
    # f32 inputs this is identical to the reference).
    o_ref[...] = (x_in * att.astype(x_in.dtype)).astype(o_ref.dtype)


def simam(x, e_lambda=1e-4, *, target_tile_f32_bytes=2 << 20, min_grid=4):
    """SimAM forward.  x: (B, C, H, W).  Returns same shape/dtype."""
    b, c, h, w = x.shape
    bc, hw = b * c, h * w
    n = float(max(hw - 1, 1))

    itemsize = jnp.dtype(x.dtype).itemsize
    # Sublane granularity by dtype (f32: 8, bf16: 16, int8/fp8: 32).
    sub = {4: 8, 2: 16, 1: 32}.get(itemsize, 8)

    # (B*C, H*W) view -- no data movement.
    x2 = x.reshape(bc, hw)

    # Row tile sized by an f32-equivalent per-buffer budget so in/out double
    # buffers + f32 temporaries stay well under the 32 MiB VMEM limit.
    bc_ceil = _round_up(bc, sub)
    rows = max(sub, _round_down(target_tile_f32_bytes // max(hw * 4, 1), sub))
    tr = min(rows, bc_ceil)
    # Keep at least `min_grid` grid steps when there is enough work so the
    # "parallel" axis can be sharded across v7x's two TensorCores.
    if bc_ceil >= min_grid * sub and pl.cdiv(bc, tr) < min_grid:
        tr = max(sub, _round_down(bc_ceil // min_grid, sub))
    grid = (pl.cdiv(bc, tr),)

    kernel = functools.partial(
        _simam_kernel, inv_hw=1.0 / hw, inv_n=1.0 / n, e_lambda=float(e_lambda))

    out2 = pl.pallas_call(
        kernel,
        out_shape=jax.ShapeDtypeStruct((bc, hw), x.dtype),
        grid=grid,
        in_specs=[pl.BlockSpec((tr, hw), lambda i: (i, 0))],
        out_specs=pl.BlockSpec((tr, hw), lambda i: (i, 0)),
        compiler_params=pltpu.CompilerParams(
            dimension_semantics=("parallel",),
            vmem_limit_bytes=32 * 1024 * 1024,
        ),
    )(x2)

    return out2.reshape(b, c, h, w)


def simam_ref(x, e_lambda=1e-4):
    """Pure-JAX reference mirroring the PyTorch SimAM forward."""
    b, c, h, w = x.shape
    n = w * h - 1
    mu = jnp.mean(x, axis=(2, 3), keepdims=True)
    d = (x - mu) ** 2
    s = jnp.sum(d, axis=(2, 3), keepdims=True)
    y = d / (4.0 * (s / n + e_lambda)) + 0.5
    return x * jax.nn.sigmoid(y)


if __name__ == "__main__":
    key = jax.random.PRNGKey(0)

    # Case 1: H*W a multiple of 128, B*C a multiple of 8 (f32).
    B, C, H, W = 2, 4, 16, 16
    x = jax.random.normal(key, (B, C, H, W), dtype=jnp.float32)
    out = jax.block_until_ready(simam(x))
    ref = simam_ref(x)
    assert out.shape == (B, C, H, W)
    assert jnp.allclose(out, ref, atol=1e-3, rtol=1e-3), "mismatch vs reference (case 1)"

    # Case 2: non-aligned shapes (H*W = 169, B*C = 5) -> partial last block,
    # full-extent lane dim; exercises the masked-store path.
    key2 = jax.random.PRNGKey(1)
    x2 = jax.random.normal(key2, (1, 5, 13, 13), dtype=jnp.float32)
    out2 = jax.block_until_ready(simam(x2))
    ref2 = simam_ref(x2)
    assert out2.shape == (1, 5, 13, 13)
    assert jnp.allclose(out2, ref2, atol=1e-3, rtol=1e-3), "mismatch vs reference (case 2)"

    # Case 3: bf16 input (f32 reductions, bf16-resident final multiply).
    key3 = jax.random.PRNGKey(2)
    x3 = jax.random.normal(key3, (2, 4, 16, 16), dtype=jnp.bfloat16)
    out3 = jax.block_until_ready(simam(x3))
    ref3 = simam_ref(x3.astype(jnp.float32))
    assert out3.shape == (2, 4, 16, 16)
    assert jnp.allclose(out3.astype(jnp.float32), ref3, atol=3e-2, rtol=3e-2), \
        "mismatch vs reference (case 3)"

    print("KERNEL_OK")
</pallas_src>

<mosaic_0001>
module attributes {stable_mosaic.version = 11 : i64} {
  func.func @_simam_kernel(%arg0: i32, %arg1: memref<8x256xf32, #tpu.memory_space<vmem>>, %arg2: memref<8x256xf32, #tpu.memory_space<vmem>>) attributes {dimension_semantics = [#tpu.dimension_semantics<parallel>], iteration_bounds = array<i64: 1>, scalar_prefetch = 0 : i64, scratch_operands = 0 : i64, tpu.core_type = #tpu.core_type<tc>, window_params = [{transform_indices = @transform_0, window_bounds = array<i64: 8, 256>}, {transform_indices = @transform_1, window_bounds = array<i64: 8, 256>}]} {
    %c0 = arith.constant 0 : index
    %c0_0 = arith.constant 0 : index
    %0 = vector.load %arg1[%c0, %c0_0] : memref<8x256xf32, #tpu.memory_space<vmem>>, vector<8x256xf32>
    %cst = arith.constant dense<0.000000e+00> : vector<8xf32>
    %1 = vector.multi_reduction <add>, %0, %cst [1] : vector<8x256xf32> to vector<8xf32>
    %2 = vector.shape_cast %1 : vector<8xf32> to vector<8x1xf32>
    %cst_1 = arith.constant 3.906250e-03 : f32
    %3 = vector.broadcast %cst_1 : f32 to vector<8x1xf32>
    %4 = arith.mulf %2, %3 : vector<8x1xf32>
    %5 = vector.broadcast %4 : vector<8x1xf32> to vector<8x256xf32>
    %6 = arith.subf %0, %5 : vector<8x256xf32>
    %7 = arith.mulf %6, %6 : vector<8x256xf32>
    %cst_2 = arith.constant dense<0.000000e+00> : vector<8xf32>
    %8 = vector.multi_reduction <add>, %7, %cst_2 [1] : vector<8x256xf32> to vector<8xf32>
    %9 = vector.shape_cast %8 : vector<8xf32> to vector<8x1xf32>
    %cst_3 = arith.constant 0.00392156886 : f32
    %10 = vector.broadcast %cst_3 : f32 to vector<8x1xf32>
    %11 = arith.mulf %9, %10 : vector<8x1xf32>
    %cst_4 = arith.constant 9.99999974E-5 : f32
    %12 = vector.broadcast %cst_4 : f32 to vector<8x1xf32>
    %13 = arith.addf %11, %12 : vector<8x1xf32>
    %cst_5 = arith.constant 4.000000e+00 : f32
    %14 = vector.broadcast %cst_5 : f32 to vector<8x1xf32>
    %15 = arith.mulf %14, %13 : vector<8x1xf32>
    %16 = tpu.reciprocal %15 {approx = true} : vector<8x1xf32> -> vector<8x1xf32>
    %17 = vector.broadcast %16 : vector<8x1xf32> to vector<8x256xf32>
    %18 = arith.mulf %7, %17 : vector<8x256xf32>
    %cst_6 = arith.constant 5.000000e-01 : f32
    %19 = vector.broadcast %cst_6 : f32 to vector<8x256xf32>
    %20 = arith.addf %18, %19 : vector<8x256xf32>
    %21 = arith.negf %20 : vector<8x256xf32>
    %22 = math.exp %21 : vector<8x256xf32>
    %cst_7 = arith.constant 1.000000e+00 : f32
    %23 = vector.broadcast %cst_7 : f32 to vector<8x256xf32>
    %24 = arith.addf %23, %22 : vector<8x256xf32>
    %25 = arith.divf %23, %24 : vector<8x256xf32>
    %26 = arith.mulf %0, %25 : vector<8x256xf32>
    %c0_8 = arith.constant 0 : index
    %c0_9 = arith.constant 0 : index
    %27 = vector.load %arg2[%c0_8, %c0_9] : memref<8x256xf32, #tpu.memory_space<vmem>>, vector<8x256xf32>
    tpu.vector_store %arg2[%c0_8, %c0_9], %26 {strides = array<i32>} : memref<8x256xf32, #tpu.memory_space<vmem>>, vector<8x256xf32>,
    return
  }
  func.func @transform_0(%arg0: i32) -> (i32, i32) {
    %c0_i32 = arith.constant 0 : i32
    %c0_i32_0 = arith.constant 0 : i32
    return %arg0, %c0_i32 : i32, i32
  }
  func.func @transform_1(%arg0: i32) -> (i32, i32) {
    %c0_i32 = arith.constant 0 : i32
    %c0_i32_0 = arith.constant 0 : i32
    return %arg0, %c0_i32 : i32, i32
  }
}

</mosaic_0001>

<llo_original>
// kernel: tpu_custom_call.1
$region0: #{tpu_custom_call.1}
  #allocation0 [shape = 'u32[]', space=smem, size = 0x4, offset = 0x4, fixed_abs, tag = 'smem constant byte address 0x4 - core index']
  #allocation1 [shape = 'u32[144,128]{1,0:T(1,128)}', space=vmem, size = 0x12000, scoped, tag = 'internal scratch']
  %s0 = inlined_call_operand.hbm [shape: f32[8,256], index: 0, kind: input, shape index: {}]
  %s1 = inlined_call_operand.hbm [shape: f32[8,256], index: 1, kind: output, shape index: {}]
  %s2 = sld [smem:[#allocation0]]
  $region18: #{tpu_custom_call.1} parent=0
    _
  %s4 = ssub.s32 1, %s2
  %s5 = scalar_select 0, %s4, %s2
  $region1: #{tpu_custom_call.1} parent=0
    #allocation2 [shape = 'u8[8192]{0}', space=vmem, size = 0x2000, scoped, tag = 'input window, operand 0, single buffered']
    #allocation3 [shape = 's32[1]{0}', space=sflag, size = 0x4, scoped, tag = 'scoped memory for tpu_custom_call.1']
    #allocation4 [shape = 's32[1]{0}', space=sflag, size = 0x4, scoped, tag = 'scoped memory for tpu_custom_call.1']
    #allocation5 [shape = 'u8[8192]{0}', space=vmem, size = 0x2000, scoped, tag = 'output window, operand 0, single buffered']
    %6 = vsyncpa [#allocation3], 0
    %7 = vsyncpa [#allocation4], 0
    // Predicated region
    $region2: #{tpu_custom_call.1} parent=1 // pred_check
      _
    $region3: #{tpu_custom_call.1} parent=1 // pred_check_branch
      %9 = sbr.rel (0) target = $region5
    $region4: #{tpu_custom_call.1} parent=1 // pred_region
      %s11 = ssub.s32 256, 256
      %12 = vsyncadd [#allocation3], %s11
      %s14 = sshll.u32 [#allocation2], 4
      %s15 = int_to_ptr.vmem [resolvable:$true] %s14
      %17 = dma.hbm_to_vmem [thread:$0]  %s0, 256, %s15, [#allocation3]
    $region5: #{tpu_custom_call.1} parent=1 // pred_fallthru
      _
    // Predicated region
    $region6: #{tpu_custom_call.1} parent=1 // pred_check
      _
    $region7: #{tpu_custom_call.1} parent=1 // pred_check_branch
      %19 = sbr.rel (0) target = $region9
    $region8: #{tpu_custom_call.1} parent=1 // pred_region
      %20 = dma.done [#allocation3], 256
    $region9: #{tpu_custom_call.1} parent=1 // pred_fallthru
      _
    %v21 = vld [vmem:[#allocation2] sm:$0xff]
    %v22 = vld [vmem:[#allocation2 + $0x8] sm:$0xff]
    %v23 = vadd.f32 %v21, %v22
    %24 = vadd.xlane.f32.xlu0 %v23
    %v25 = vpop.xlane.xlu0 %24
    %v26 = vmul.f32 %v25, 0.00390625
    %v27 = vsub.f32 %v21, %v26
    %v28 = vsub.f32 %v22, %v26
    %v29 = vmul.f32 %v27, %v27
    %v30 = vmul.f32 %v28, %v28
    %v31 = vadd.f32 %v29, %v30
    %32 = vadd.xlane.f32.xlu0 %v31
    %v33 = vpop.xlane.xlu0 %32
    %v34 = vmul.f32 %v33, 0.003921569
    %v35 = vadd.f32 %v34, 0.0001
    %v36 = vmul.f32 %v35, 4.0
    %v37 = vrcp.pop %v36
    %v38 = vmul.f32 %v29, %v37
    %v39 = vmul.f32 %v30, %v37
    %v40 = vadd.f32 %v38, 0.5
    %v41 = vadd.f32 %v39, 0.5
    %v42 = vxor.u32 %v40, 2147483648
    %v43 = vxor.u32 %v41, 2147483648
    %v44 = vmul.f32 %v42, 1.442695
    %v45 = vpow.pop %v44
    %v46 = vmul.f32 %v43, 1.442695
    %v47 = vpow.pop %v46
    %v48 = vadd.f32 %v45, 1.0
    %v49 = vadd.f32 %v47, 1.0
    %v50 = vrcp.pop %v48
    %v51 = vmul.f32 1.0, %v50
    %v52 = vrcp.pop %v49
    %v53 = vmul.f32 1.0, %v52
    %v54 = vmul.f32 %v21, %v51
    %v55 = vmul.f32 %v22, %v53
    %56 = vst [vmem:[#allocation5] sm:$0xff] %v54
    %57 = vst [vmem:[#allocation5 + $0x8] sm:$0xff] %v55
    // Predicated region
    $region10: #{tpu_custom_call.1} parent=1 // pred_check
      _
    $region11: #{tpu_custom_call.1} parent=1 // pred_check_branch
      %59 = sbr.rel (0) target = $region13
    $region12: #{tpu_custom_call.1} parent=1 // pred_region
      %s61 = ssub.s32 256, 256
      %62 = vsyncadd [#allocation4], %s61
      %s64 = sshll.u32 [#allocation5], 4
      %s65 = int_to_ptr.vmem [resolvable:$true] %s64
      %67 = dma.vmem_to_hbm [thread:$0]  %s65, 256, %s1, [#allocation4]
    $region13: #{tpu_custom_call.1} parent=1 // pred_fallthru
      _
    // Predicated region
    $region14: #{tpu_custom_call.1} parent=1 // pred_check
      _
    $region15: #{tpu_custom_call.1} parent=1 // pred_check_branch
      %69 = sbr.rel (0) target = $region17
    $region16: #{tpu_custom_call.1} parent=1 // pred_region
      %70 = dma.done [#allocation4], 256
    $region17: #{tpu_custom_call.1} parent=1 // pred_fallthru
      _
    %71 = vsyncpa [#allocation3], 1
    %72 = vsyncpa [#allocation4], 1

</llo_original>
